<compile_context>
chip_gen: v7x
topology: tpu7x:2x2x1
jax: 0.10.0
libtpu: 0.0.40
codegen_flags: <defaults>
</compile_context>

<pallas_src>
import functools

import jax
import jax.numpy as jnp
import numpy as np
from jax.experimental import pallas as pl
from jax.experimental.pallas import tpu as pltpu


def _make_loss_kernel(n_class, trg_pad_idx, smoothing, n_total, tn, needs_mask):
    eps = 0.1  # matches the hard-coded eps in the PyTorch forward
    if smoothing > 0:
        a = eps / (n_class - 1)
        b = 1.0 - eps - a
    else:
        a, b = 0.0, 1.0

    def kernel(pred_ref, gold_ref, sum_ref, cnt_ref):
        n_idx = pl.program_id(1)

        # Per-batch accumulators (output block is resident across the n axis).
        @pl.when(n_idx == 0)
        def _init():
            sum_ref[...] = jnp.zeros_like(sum_ref)
            cnt_ref[...] = jnp.zeros_like(cnt_ref)

        logits = pred_ref[0].astype(jnp.float32)      # (C, TN), f32 compute
        gold = gold_ref[0]                            # (1, TN) int32

        if needs_mask:
            # Ragged last tile: columns >= n_total are out-of-bounds garbage.
            col = jax.lax.broadcasted_iota(jnp.int32, (1, tn), 1) + n_idx * tn
            in_bounds = col < n_total                 # (1, TN) bool
            logits = jnp.where(in_bounds, logits, 0.0)   # kill OOB garbage/NaN
            valid = jnp.logical_and(in_bounds, gold != trg_pad_idx)
        else:
            valid = gold != trg_pad_idx
        valid_f = valid.astype(jnp.float32)           # (1, TN)

        # Numerically stable log-softmax along the class (sublane) axis.
        m = jnp.max(logits, axis=0, keepdims=True)    # (1, TN)
        shifted = logits - m                          # (C, TN)
        lse = jnp.log(jnp.sum(jnp.exp(shifted), axis=0, keepdims=True))  # (1, TN)

        # shifted[gold] via sublane-iota compare (no gather needed).
        classes = jax.lax.broadcasted_iota(jnp.int32, (n_class, tn), 0)
        shifted_gold = jnp.sum(
            jnp.where(classes == gold, shifted, 0.0), axis=0, keepdims=True)

        if smoothing > 0:
            sum_shifted = jnp.sum(shifted, axis=0, keepdims=True)
            loss = lse - (a * sum_shifted + b * shifted_gold)   # (1, TN)
        else:
            # F.cross_entropy path: -log p[gold]
            loss = lse - shifted_gold

        sum_ref[...] = sum_ref[...] + jnp.sum(loss * valid_f)
        cnt_ref[...] = cnt_ref[...] + jnp.sum(valid_f)

    return kernel


@functools.partial(jax.jit, static_argnames=("trg_pad_idx", "smoothing", "tn"))
def smoothing_cross_entropy_loss(pred, gold, *, trg_pad_idx=999999,
                                 smoothing=0.0, tn=4096):
    """pred: (B, C, N) float (any dtype); gold: (B, N) int. Returns scalar mean loss."""
    B, C, N = pred.shape
    gold3 = gold.astype(jnp.int32).reshape(B, 1, N)   # lane-dense targets

    # Tile along N (lane axis); multiple of 128, no padding copy (ragged tile masked).
    n128 = pl.cdiv(N, 128) * 128
    tn_eff = max(128, (min(tn, n128) // 128) * 128)
    nt = pl.cdiv(N, tn_eff)
    needs_mask = (N % tn_eff) != 0

    kernel = _make_loss_kernel(C, trg_pad_idx, smoothing, N, tn_eff, needs_mask)

    sum_b, cnt_b = pl.pallas_call(
        kernel,
        out_shape=(jax.ShapeDtypeStruct((B, 1, 1), jnp.float32),
                   jax.ShapeDtypeStruct((B, 1, 1), jnp.float32)),
        grid_spec=pltpu.PrefetchScalarGridSpec(
            num_scalar_prefetch=0,
            grid=(B, nt),
            in_specs=[
                pl.BlockSpec((1, C, tn_eff), lambda bi, ni: (bi, 0, ni)),
                pl.BlockSpec((1, 1, tn_eff), lambda bi, ni: (bi, 0, ni)),
            ],
            out_specs=(
                pl.BlockSpec((1, 1, 1), lambda bi, ni: (bi, 0, 0)),
                pl.BlockSpec((1, 1, 1), lambda bi, ni: (bi, 0, 0)),
            ),
        ),
        compiler_params=pltpu.CompilerParams(
            dimension_semantics=("parallel", "arbitrary")),
    )(pred, gold3)

    # Final mean in plain JAX (tiny). NaN if every target is pad, same as reference.
    return jnp.sum(sum_b) / jnp.sum(cnt_b)


def _reference_loss(pred, gold, trg_pad_idx, smoothing):
    """Pure-JAX reference mirroring the PyTorch forward."""
    B, C, N = pred.shape
    p = jnp.transpose(pred, (0, 2, 1)).reshape(-1, C).astype(jnp.float32)
    g = gold.reshape(-1).astype(jnp.int32)
    logp = jax.nn.log_softmax(p, axis=1)
    non_pad = (g != trg_pad_idx)
    g_safe = jnp.where(non_pad, g, 0)
    oh = jax.nn.one_hot(g_safe, C, dtype=jnp.float32)
    if smoothing > 0:
        eps = 0.1
        w = oh * (1.0 - eps) + (1.0 - oh) * eps / (C - 1)
    else:
        w = oh
    loss = -(w * logp).sum(axis=1)
    return (loss * non_pad).sum() / non_pad.sum()


if __name__ == "__main__":
    key = jax.random.PRNGKey(0)
    B, C, N = 2, 13, 200          # (batch, n_class, n_points)
    k1, k2 = jax.random.split(key)

    pred = jax.random.normal(k1, (B, C, N), dtype=jnp.float32)
    gold = jax.random.randint(k2, (B, N), 0, C, dtype=jnp.int32)
    PAD = 999999
    gold = gold.at[0, :5].set(PAD)
    gold = gold.at[1, 100:110].set(PAD)

    # smoothed branch and plain cross-entropy branch (ragged N -> masked last tile)
    for smoothing in (0.2, 0.0):
        out = smoothing_cross_entropy_loss(
            pred, gold, trg_pad_idx=PAD, smoothing=smoothing)
        out = jax.block_until_ready(out)
        ref = _reference_loss(pred, gold, PAD, smoothing)
        np.testing.assert_allclose(np.asarray(out), np.asarray(ref),
                                   rtol=1e-5, atol=1e-5)

    # native bf16 passthrough (no wrapper upcast; kernel computes in f32)
    pred_bf = pred.astype(jnp.bfloat16)
    out = smoothing_cross_entropy_loss(pred_bf, gold, trg_pad_idx=PAD, smoothing=0.2)
    out = jax.block_until_ready(out)
    ref = _reference_loss(pred_bf, gold, PAD, 0.2)
    np.testing.assert_allclose(np.asarray(out), np.asarray(ref),
                               rtol=1e-4, atol=1e-4)

    # tile-aligned N (exercises the unmasked fast path)
    N2 = 256
    pred2 = jax.random.normal(jax.random.PRNGKey(1), (B, C, N2), dtype=jnp.float32)
    gold2 = jax.random.randint(jax.random.PRNGKey(2), (B, N2), 0, C, dtype=jnp.int32)
    gold2 = gold2.at[0, :7].set(PAD)
    out = smoothing_cross_entropy_loss(pred2, gold2, trg_pad_idx=PAD, smoothing=0.2)
    out = jax.block_until_ready(out)
    ref = _reference_loss(pred2, gold2, PAD, 0.2)
    np.testing.assert_allclose(np.asarray(out), np.asarray(ref),
                               rtol=1e-5, atol=1e-5)

    print("KERNEL_OK")
</pallas_src>

<mosaic_0001>
module attributes {stable_mosaic.version = 11 : i64} {
  func.func @kernel(%arg0: i32, %arg1: i32, %arg2: memref<1x13x256xf32, #tpu.memory_space<vmem>>, %arg3: memref<1x1x256xi32, #tpu.memory_space<vmem>>, %arg4: memref<1x1x1xf32, #tpu.memory_space<vmem>>, %arg5: memref<1x1x1xf32, #tpu.memory_space<vmem>>) attributes {dimension_semantics = [#tpu.dimension_semantics<parallel>, #tpu.dimension_semantics<arbitrary>], iteration_bounds = array<i64: 2, 1>, scalar_prefetch = 0 : i64, scratch_operands = 0 : i64, tpu.core_type = #tpu.core_type<tc>, window_params = [{transform_indices = @transform_0, window_bounds = array<i64: 1, 13, 256>}, {transform_indices = @transform_1, window_bounds = array<i64: 1, 1, 256>}, {transform_indices = @transform_2, window_bounds = array<i64: 1, 1, 1>}, {transform_indices = @transform_3, window_bounds = array<i64: 1, 1, 1>}]} {
    %c0_i32 = arith.constant 0 : i32
    %0 = arith.cmpi eq, %arg1, %c0_i32 : i32
    %1 = arith.extui %0 : i1 to i32
    %c0_i32_0 = arith.constant 0 : i32
    %2 = arith.cmpi ne, %1, %c0_i32_0 : i32
    scf.if %2 {
      %cst_27 = arith.constant 0.000000e+00 : f32
      %62 = vector.broadcast %cst_27 : f32 to vector<1x1x1xf32>
      %c0_28 = arith.constant 0 : index
      %c0_29 = arith.constant 0 : index
      %c0_30 = arith.constant 0 : index
      %63 = vector.load %arg4[%c0_28, %c0_29, %c0_30] : memref<1x1x1xf32, #tpu.memory_space<vmem>>, vector<1x1x1xf32>
      tpu.vector_store %arg4[%c0_28, %c0_29, %c0_30], %62 {strides = array<i32>} : memref<1x1x1xf32, #tpu.memory_space<vmem>>, vector<1x1x1xf32>,
      %cst_31 = arith.constant 0.000000e+00 : f32
      %64 = vector.broadcast %cst_31 : f32 to vector<1x1x1xf32>
      %c0_32 = arith.constant 0 : index
      %c0_33 = arith.constant 0 : index
      %c0_34 = arith.constant 0 : index
      %65 = vector.load %arg5[%c0_32, %c0_33, %c0_34] : memref<1x1x1xf32, #tpu.memory_space<vmem>>, vector<1x1x1xf32>
      tpu.vector_store %arg5[%c0_32, %c0_33, %c0_34], %64 {strides = array<i32>} : memref<1x1x1xf32, #tpu.memory_space<vmem>>, vector<1x1x1xf32>,
    } else {
    }
    %c0 = arith.constant 0 : index
    %c0_1 = arith.constant 0 : index
    %c0_2 = arith.constant 0 : index
    %3 = vector.load %arg2[%c0, %c0_1, %c0_2] : memref<1x13x256xf32, #tpu.memory_space<vmem>>, vector<1x13x256xf32>
    %4 = vector.shape_cast %3 : vector<1x13x256xf32> to vector<13x256xf32>
    %c0_3 = arith.constant 0 : index
    %c0_4 = arith.constant 0 : index
    %c0_5 = arith.constant 0 : index
    %5 = vector.load %arg3[%c0_3, %c0_4, %c0_5] : memref<1x1x256xi32, #tpu.memory_space<vmem>>, vector<1x1x256xi32>
    %6 = vector.shape_cast %5 : vector<1x1x256xi32> to vector<1x256xi32>
    %7 = tpu.iota {dimensions = array<i32: 1>} : vector<1x256xi32>
    %c256_i32 = arith.constant 256 : i32
    %8 = arith.muli %arg1, %c256_i32 : i32
    %9 = vector.broadcast %8 : i32 to vector<1x256xi32>
    %10 = arith.addi %7, %9 : vector<1x256xi32>
    %c200_i32 = arith.constant 200 : i32
    %11 = vector.broadcast %c200_i32 : i32 to vector<1x256xi32>
    %12 = arith.cmpi slt, %10, %11 : vector<1x256xi32>
    %cst = arith.constant 0.000000e+00 : f32
    %13 = vector.shape_cast %12 : vector<1x256xi1> to vector<1x256xi1>
    %14 = vector.broadcast %13 : vector<1x256xi1> to vector<13x256xi1>
    %15 = vector.broadcast %cst : f32 to vector<13x256xf32>
    %16 = arith.select %14, %4, %15 : vector<13x256xi1>, vector<13x256xf32>
    %c999999_i32 = arith.constant 999999 : i32
    %17 = vector.broadcast %c999999_i32 : i32 to vector<1x256xi32>
    %18 = arith.cmpi ne, %6, %17 : vector<1x256xi32>
    %19 = arith.andi %12, %18 : vector<1x256xi1>
    %20 = arith.extui %19 : vector<1x256xi1> to vector<1x256xi32>
    %21 = arith.sitofp %20 : vector<1x256xi32> to vector<1x256xf32>
    %cst_6 = arith.constant dense<0xFF800000> : vector<256xf32>
    %22 = vector.multi_reduction <maximumf>, %16, %cst_6 [0] : vector<13x256xf32> to vector<256xf32>
    %23 = vector.shape_cast %22 : vector<256xf32> to vector<1x256xf32>
    %24 = vector.broadcast %23 : vector<1x256xf32> to vector<13x256xf32>
    %25 = arith.subf %16, %24 : vector<13x256xf32>
    %26 = math.exp %25 : vector<13x256xf32>
    %cst_7 = arith.constant dense<0.000000e+00> : vector<256xf32>
    %27 = vector.multi_reduction <add>, %26, %cst_7 [0] : vector<13x256xf32> to vector<256xf32>
    %28 = vector.shape_cast %27 : vector<256xf32> to vector<1x256xf32>
    %29 = math.log %28 : vector<1x256xf32>
    %30 = tpu.iota {dimensions = array<i32: 0>} : vector<13x256xi32>
    %31 = vector.broadcast %6 : vector<1x256xi32> to vector<13x256xi32>
    %32 = arith.cmpi eq, %30, %31 : vector<13x256xi32>
    %cst_8 = arith.constant 0.000000e+00 : f32
    %33 = vector.broadcast %cst_8 : f32 to vector<13x256xf32>
    %34 = arith.select %32, %25, %33 : vector<13x256xi1>, vector<13x256xf32>
    %cst_9 = arith.constant dense<0.000000e+00> : vector<256xf32>
    %35 = vector.multi_reduction <add>, %34, %cst_9 [0] : vector<13x256xf32> to vector<256xf32>
    %36 = vector.shape_cast %35 : vector<256xf32> to vector<1x256xf32>
    %cst_10 = arith.constant dense<0.000000e+00> : vector<256xf32>
    %37 = vector.multi_reduction <add>, %25, %cst_10 [0] : vector<13x256xf32> to vector<256xf32>
    %38 = vector.shape_cast %37 : vector<256xf32> to vector<1x256xf32>
    %cst_11 = arith.constant 0.00833333377 : f32
    %39 = vector.broadcast %cst_11 : f32 to vector<1x256xf32>
    %40 = arith.mulf %39, %38 : vector<1x256xf32>
    %cst_12 = arith.constant 0.891666651 : f32
    %41 = vector.broadcast %cst_12 : f32 to vector<1x256xf32>
    %42 = arith.mulf %41, %36 : vector<1x256xf32>
    %43 = arith.addf %40, %42 : vector<1x256xf32>
    %44 = arith.subf %29, %43 : vector<1x256xf32>
    %c0_13 = arith.constant 0 : index
    %c0_14 = arith.constant 0 : index
    %c0_15 = arith.constant 0 : index
    %45 = vector.load %arg4[%c0_13, %c0_14, %c0_15] : memref<1x1x1xf32, #tpu.memory_space<vmem>>, vector<1x1x1xf32>
    %46 = arith.mulf %44, %21 : vector<1x256xf32>
    %47 = vector.shape_cast %46 : vector<1x256xf32> to vector<1x1x256xf32>
    %cst_16 = arith.constant dense<0.000000e+00> : vector<1xf32>
    %48 = vector.multi_reduction <add>, %47, %cst_16 [1, 2] : vector<1x1x256xf32> to vector<1xf32>
    %49 = vector.shape_cast %48 : vector<1xf32> to vector<1x1x1xf32>
    %50 = vector.extract %49[0, 0, 0] : f32 from vector<1x1x1xf32>
    %51 = vector.broadcast %50 : f32 to vector<1x1x1xf32>
    %52 = arith.addf %45, %51 : vector<1x1x1xf32>
    %c0_17 = arith.constant 0 : index
    %c0_18 = arith.constant 0 : index
    %c0_19 = arith.constant 0 : index
    %53 = vector.load %arg4[%c0_17, %c0_18, %c0_19] : memref<1x1x1xf32, #tpu.memory_space<vmem>>, vector<1x1x1xf32>
    tpu.vector_store %arg4[%c0_17, %c0_18, %c0_19], %52 {strides = array<i32>} : memref<1x1x1xf32, #tpu.memory_space<vmem>>, vector<1x1x1xf32>,
    %c0_20 = arith.constant 0 : index
    %c0_21 = arith.constant 0 : index
    %c0_22 = arith.constant 0 : index
    %54 = vector.load %arg5[%c0_20, %c0_21, %c0_22] : memref<1x1x1xf32, #tpu.memory_space<vmem>>, vector<1x1x1xf32>
    %55 = vector.shape_cast %21 : vector<1x256xf32> to vector<1x1x256xf32>
    %cst_23 = arith.constant dense<0.000000e+00> : vector<1xf32>
    %56 = vector.multi_reduction <add>, %55, %cst_23 [1, 2] : vector<1x1x256xf32> to vector<1xf32>
    %57 = vector.shape_cast %56 : vector<1xf32> to vector<1x1x1xf32>
    %58 = vector.extract %57[0, 0, 0] : f32 from vector<1x1x1xf32>
    %59 = vector.broadcast %58 : f32 to vector<1x1x1xf32>
    %60 = arith.addf %54, %59 : vector<1x1x1xf32>
    %c0_24 = arith.constant 0 : index
    %c0_25 = arith.constant 0 : index
    %c0_26 = arith.constant 0 : index
    %61 = vector.load %arg5[%c0_24, %c0_25, %c0_26] : memref<1x1x1xf32, #tpu.memory_space<vmem>>, vector<1x1x1xf32>
    tpu.vector_store %arg5[%c0_24, %c0_25, %c0_26], %60 {strides = array<i32>} : memref<1x1x1xf32, #tpu.memory_space<vmem>>, vector<1x1x1xf32>,
    return
  }
  func.func @transform_0(%arg0: i32, %arg1: i32) -> (i32, i32, i32) {
    %c0_i32 = arith.constant 0 : i32
    %c0_i32_0 = arith.constant 0 : i32
    return %arg0, %c0_i32, %arg1 : i32, i32, i32
  }
  func.func @transform_1(%arg0: i32, %arg1: i32) -> (i32, i32, i32) {
    %c0_i32 = arith.constant 0 : i32
    %c0_i32_0 = arith.constant 0 : i32
    return %arg0, %c0_i32, %arg1 : i32, i32, i32
  }
  func.func @transform_2(%arg0: i32, %arg1: i32) -> (i32, i32, i32) {
    %c0_i32 = arith.constant 0 : i32
    %c0_i32_0 = arith.constant 0 : i32
    %c0_i32_1 = arith.constant 0 : i32
    return %arg0, %c0_i32, %c0_i32_0 : i32, i32, i32
  }
  func.func @transform_3(%arg0: i32, %arg1: i32) -> (i32, i32, i32) {
    %c0_i32 = arith.constant 0 : i32
    %c0_i32_0 = arith.constant 0 : i32
    %c0_i32_1 = arith.constant 0 : i32
    return %arg0, %c0_i32, %c0_i32_0 : i32, i32, i32
  }
}

</mosaic_0001>

<llo_original>
// kernel: smoothing_cross_entropy_loss.1
$region0: #{smoothing_cross_entropy_loss.1}
  #allocation0 [shape = 'u32[]', space=smem, size = 0x4, offset = 0x4, fixed_abs, tag = 'smem constant byte address 0x4 - core index']
  #allocation1 [shape = 'u32[144,128]{1,0:T(1,128)}', space=vmem, size = 0x12000, scoped, tag = 'internal scratch']
  %s0 = inlined_call_operand.vmem [shape: f32[2,13,200], index: 0, kind: input, shape index: {}]
  %s1 = inlined_call_operand.vmem [shape: s32[2,1,200], index: 1, kind: input, shape index: {}]
  %s2 = inlined_call_operand.vmem [shape: f32[2,1,1], index: 2, kind: output, shape index: {0}]
  %s3 = inlined_call_operand.vmem [shape: f32[2,1,1], index: 3, kind: output, shape index: {1}]
  %4 = xla_tuple %s2, %s3
  %s5 = sld [smem:[#allocation0]]
  $region53: #{smoothing_cross_entropy_loss.1} parent=0
    _
  %s7 = ssub.s32 1, %s5
  %s8 = scalar_select 0, %s7, %s5
  loop: start=0, step=1, limit=4
  $region2: #{smoothing_cross_entropy_loss.1} parent=0 // loop_pre_header
    _
  $region3: #{smoothing_cross_entropy_loss.1} parent=0 // loop_header
    %s10 = sphi 0, %s14
    %p11 = scmp.ge.s32.totalorder %s10, 4
    %s17 = sphi 0, %s29
    %s18 = sphi 0, %s25
    %s19 = sphi 0, %s17
    %s20 = sphi 0, %s18
    %s21 = sphi 0, %s19
    %s22 = sphi 0, %s20
    %s34 = sphi 0, %s36
    %s37 = sphi 0, %s34
    %s38 = sphi 0, %s37
    %s54 = sphi 0, %s38
    %s62 = sphi 0, %s64
    %s65 = sphi 0, %s62
    %s66 = sphi 0, %s65
    %s82 = sphi 0, %s66
    %s88 = sphi 0, %s90
    %s91 = sphi 0, %s88
    %s92 = sphi 0, %s91
    %s108 = sphi 0, %s92
    %s114 = sphi 0, %s116
    %s117 = sphi 0, %s114
    %s118 = sphi 0, %s117
    %s134 = sphi 0, %s118
  $region4: #{smoothing_cross_entropy_loss.1} parent=0 // loop_header_branch
    %13 = sbr.rel (%p11) target = $region8
  $region5: #{smoothing_cross_entropy_loss.1} parent=0 // loop_body
    %s15 = ssub.s32 %s10, 1
    %s16 = ssub.s32 %s10, 2
    %s23 = sadd.s32 1, %s18
    %p24 = scmp.ge.s32.totalorder %s23, 1
    %s25 = scalar_select %p24, 0, %s23
    %s26 = sadd.s32 1, %s17
    %s27 = scalar_select %p24, %s26, %s17
    %p28 = scmp.ge.s32.totalorder %s27, 2
    %s29 = scalar_select %p28, 0, %s27
    %s30 = ssub.s32 %s17, %s29
    %s31 = ssub.s32 %s18, %s25
    %s32 = sor.u32 %s30, %s31
    %p33 = scmp.eq.s32.totalorder %s32, 0
    %s35 = sadd.s32 %s34, 1
    %s36 = scalar_select %p33, %s34, %s35
    %p39 = pneg %p33
    %p40 = scmp.eq.s32.totalorder %s10, 1
    %p41 = por %p39, %p40
    %p42 = scmp.ne.s32.totalorder %s34, %s37
    %p43 = scmp.eq.s32.totalorder %s10, 0
    %p44 = por %p42, %p43
    %p45 = scmp.ne.s32.totalorder %s34, %s37
    %p46 = scmp.eq.s32.totalorder %s15, 1
    %p47 = por %p45, %p46
    %p48 = scmp.ne.s32.totalorder %s37, %s38
    %p49 = scmp.eq.s32.totalorder %s15, 0
    %p50 = por %p48, %p49
    %p51 = scmp.ne.s32.totalorder %s37, %s38
    %p52 = scmp.eq.s32.totalorder %s16, 1
    %p53 = por %p51, %p52
    %p55 = scmp.ne.s32.totalorder %s38, %s54
    %p56 = scmp.eq.s32.totalorder %s16, 0
    %p57 = por %p55, %p56
    %s58 = ssub.s32 %s17, %s29
    %s59 = ssub.s32 %s18, %s25
    %s60 = sor.u32 %s58, %s59
    %p61 = scmp.eq.s32.totalorder %s60, 0
    %s63 = sadd.s32 %s62, 1
    %s64 = scalar_select %p61, %s62, %s63
    %p67 = pneg %p61
    %p68 = scmp.eq.s32.totalorder %s10, 1
    %p69 = por %p67, %p68
    %p70 = scmp.ne.s32.totalorder %s62, %s65
    %p71 = scmp.eq.s32.totalorder %s10, 0
    %p72 = por %p70, %p71
    %p73 = scmp.ne.s32.totalorder %s62, %s65
    %p74 = scmp.eq.s32.totalorder %s15, 1
    %p75 = por %p73, %p74
    %p76 = scmp.ne.s32.totalorder %s65, %s66
    %p77 = scmp.eq.s32.totalorder %s15, 0
    %p78 = por %p76, %p77
    %p79 = scmp.ne.s32.totalorder %s65, %s66
    %p80 = scmp.eq.s32.totalorder %s16, 1
    %p81 = por %p79, %p80
    %p83 = scmp.ne.s32.totalorder %s66, %s82
    %p84 = scmp.eq.s32.totalorder %s16, 0
    %p85 = por %p83, %p84
    %s86 = ssub.s32 %s17, %s29
    %p87 = scmp.eq.s32.totalorder %s86, 0
    %s89 = sadd.s32 %s88, 1
    %s90 = scalar_select %p87, %s88, %s89
    %p93 = pneg %p87
    %p94 = scmp.eq.s32.totalorder %s10, 1
    %p95 = por %p93, %p94
    %p96 = scmp.ne.s32.totalorder %s88, %s91
    %p97 = scmp.eq.s32.totalorder %s10, 0
    %p98 = por %p96, %p97
    %p99 = scmp.ne.s32.totalorder %s88, %s91
    %p100 = scmp.eq.s32.totalorder %s15, 1
    %p101 = por %p99, %p100
    %p102 = scmp.ne.s32.totalorder %s91, %s92
    %p103 = scmp.eq.s32.totalorder %s15, 0
    %p104 = por %p102, %p103
    %p105 = scmp.ne.s32.totalorder %s91, %s92
    %p106 = scmp.eq.s32.totalorder %s16, 1
    %p107 = por %p105, %p106
    %p109 = scmp.ne.s32.totalorder %s92, %s108
    %p110 = scmp.eq.s32.totalorder %s16, 0
    %p111 = por %p109, %p110
    %s112 = ssub.s32 %s17, %s29
    %p113 = scmp.eq.s32.totalorder %s112, 0
    %s115 = sadd.s32 %s114, 1
    %s116 = scalar_select %p113, %s114, %s115
    %p119 = pneg %p113
    %p120 = scmp.eq.s32.totalorder %s10, 1
    %p121 = por %p119, %p120
    %p122 = scmp.ne.s32.totalorder %s114, %s117
    %p123 = scmp.eq.s32.totalorder %s10, 0
    %p124 = por %p122, %p123
    %p125 = scmp.ne.s32.totalorder %s114, %s117
    %p126 = scmp.eq.s32.totalorder %s15, 1
    %p127 = por %p125, %p126
    %p128 = scmp.ne.s32.totalorder %s117, %s118
    %p129 = scmp.eq.s32.totalorder %s15, 0
    %p130 = por %p128, %p129
    %p131 = scmp.ne.s32.totalorder %s117, %s118
    %p132 = scmp.eq.s32.totalorder %s16, 1
    %p133 = por %p131, %p132
    %p135 = scmp.ne.s32.totalorder %s118, %s134
    %p136 = scmp.eq.s32.totalorder %s16, 0
    %p137 = por %p135, %p136
    %p138 = scmp.le.s32.totalorder 1, %s10
    %p139 = scmp.lt.s32.totalorder %s10, 3
    %p140 = pnand %p138, %p139
    %p141 = pneg %p140
    // Predicated region
    $region9: #{smoothing_cross_entropy_loss.1} parent=5 // pred_check
      _
    $region10: #{smoothing_cross_entropy_loss.1} parent=5 // pred_check_branch
      %143 = sbr.rel (%p140) target = $region12
    $region11: #{smoothing_cross_entropy_loss.1} parent=5 // pred_region
      %s144 = ssub.s32 %s10, 1
    $region12: #{smoothing_cross_entropy_loss.1} parent=5 // pred_fallthru
      _
    %p145 = scmp.lt.s32.totalorder %s10, 2
    // Predicated region
    $region13: #{smoothing_cross_entropy_loss.1} parent=5 // pred_check
      %p146 = pneg %p145
    $region14: #{smoothing_cross_entropy_loss.1} parent=5 // pred_check_branch
      %148 = sbr.rel (%p146) target = $region16
    $region15: #{smoothing_cross_entropy_loss.1} parent=5 // pred_region
      // Predicated region
      $region17: #{smoothing_cross_entropy_loss.1} parent=15 // pred_check
        %p149 = pneg %p44
      $region18: #{smoothing_cross_entropy_loss.1} parent=15 // pred_check_branch
        %151 = sbr.rel (%p149) target = $region20
      $region19: #{smoothing_cross_entropy_loss.1} parent=15 // pred_region
        %s152 = smul.u32 2, %s18
        %p153 = scmp.lt.s32.totalorder %s17, 1
        %s154 = scalar_select %p153, %s17, 1
        %p155 = scmp.lt.s32.totalorder %s152, 1
        %s156 = scalar_select %p155, %s152, 1
        %s157 = smul.addr %s154, 4
        %s158 = sadd.s32 %s156, %s157
        %s159 = smul.addr %s158, 8
        %s160 = scalar_lea.vmem %s0, %s159
        %s161 = smul.u32 2, %s18
      $region20: #{smoothing_cross_entropy_loss.1} parent=15 // pred_fallthru
        _
      // Predicated region
      $region21: #{smoothing_cross_entropy_loss.1} parent=15 // pred_check
        %p162 = pneg %p72
      $region22: #{smoothing_cross_entropy_loss.1} parent=15 // pred_check_branch
        %164 = sbr.rel (%p162) target = $region24
      $region23: #{smoothing_cross_entropy_loss.1} parent=15 // pred_region
        %s165 = smul.u32 2, %s18
        %p166 = scmp.lt.s32.totalorder %s17, 1
        %s167 = scalar_select %p166, %s17, 1
        %p168 = scmp.lt.s32.totalorder %s165, 1
        %s169 = scalar_select %p168, %s165, 1
        %s170 = smul.addr %s167, 2
        %s171 = sadd.s32 %s169, %s170
        %s172 = scalar_lea.vmem %s1, %s171
        %s173 = smul.u32 2, %s18
      $region24: #{smoothing_cross_entropy_loss.1} parent=15 // pred_fallthru
        _
    $region16: #{smoothing_cross_entropy_loss.1} parent=5 // pred_fallthru
      _
    %p174 = scmp.le.s32.totalorder 1, %s10
    %p175 = scmp.lt.s32.totalorder %s10, 3
    %p176 = pnand %p174, %p175
    %p177 = pneg %p176
    // Predicated region
    $region25: #{smoothing_cross_entropy_loss.1} parent=5 // pred_check
      _
    $region26: #{smoothing_cross_entropy_loss.1} parent=5 // pred_check_branch
      %179 = sbr.rel (%p176) target = $region28
    $region27: #{smoothing_cross_entropy_loss.1} parent=5 // pred_region
      %s180 = ssub.s32 %s10, 1
      %s181 = smul.u32 2, %s20
      %p182 = scmp.lt.s32.totalorder %s19, 1
      %s183 = scalar_select %p182, %s19, 1
      %p184 = scmp.lt.s32.totalorder %s181, 1
      %s185 = scalar_select %p184, %s181, 1
      %s186 = smul.addr %s183, 4
      %s187 = sadd.s32 %s185, %s186
      %s188 = smul.addr %s187, 8
      %s189 = scalar_lea.vmem %s0, %s188
      %p190 = pneg %p50
      %p191 = pneg %p47
      %s192 = smul.u32 2, %s20
      %p193 = scmp.lt.s32.totalorder %s19, 1
      %s194 = scalar_select %p193, %s19, 1
      %p195 = scmp.lt.s32.totalorder %s192, 1
      %s196 = scalar_select %p195, %s192, 1
      %s197 = smul.addr %s194, 2
      %s198 = sadd.s32 %s196, %s197
      %s199 = scalar_lea.vmem %s1, %s198
      %p200 = pneg %p78
      %p201 = pneg %p75
      %p202 = pneg %p104
      %p203 = pneg %p101
      %p204 = scmp.lt.s32.totalorder %s19, 1
      %s205 = scalar_select %p204, %s19, 1
      %s206 = scalar_lea.vmem %s2, %s205
      %p207 = pneg %p130
      %p208 = pneg %p127
      %p209 = scmp.lt.s32.totalorder %s19, 1
      %s210 = scalar_select %p209, %s19, 1
      %s211 = scalar_lea.vmem %s3, %s210
      %s212 = smul.u32 2, %s20
      %p213 = scmp.lt.s32.totalorder %s19, 1
      %s214 = scalar_select %p213, %s19, 1
      %p215 = scmp.lt.s32.totalorder %s212, 1
      %s216 = scalar_select %p215, %s212, 1
      %s217 = smul.addr %s214, 4
      %s218 = sadd.s32 %s216, %s217
      %s219 = smul.addr %s218, 8
      %s220 = scalar_lea.vmem %s0, %s219
      %s221 = smul.u32 2, %s20
      %s222 = smul.u32 2, %s20
      %p223 = scmp.lt.s32.totalorder %s19, 1
      %s224 = scalar_select %p223, %s19, 1
      %p225 = scmp.lt.s32.totalorder %s222, 1
      %s226 = scalar_select %p225, %s222, 1
      %s227 = smul.addr %s224, 2
      %s228 = sadd.s32 %s226, %s227
      %s229 = scalar_lea.vmem %s1, %s228
      %s230 = smul.u32 2, %s20
      %p231 = scmp.lt.s32.totalorder %s19, 1
      %s232 = scalar_select %p231, %s19, 1
      %s233 = scalar_lea.vmem %s2, %s232
      %p234 = scmp.lt.s32.totalorder %s19, 1
      %s235 = scalar_select %p234, %s19, 1
      %s236 = scalar_lea.vmem %s3, %s235
      %p237 = scmp.eq.s32.totalorder %s20, 0
      // Predicated region
      $region29: #{smoothing_cross_entropy_loss.1} parent=27 // pred_check
        %p238 = pneg %p237
      $region30: #{smoothing_cross_entropy_loss.1} parent=27 // pred_check_branch
        %240 = sbr.rel (%p238) target = $region32
      $region31: #{smoothing_cross_entropy_loss.1} parent=27 // pred_region
        %vm241 = vcmask 0
        %242 = vst.msk [vmem:[%s233] sm:$0x1] %vm241, 0.0
        %243 = vst.msk [vmem:[%s236] sm:$0x1] %vm241, 0.0
      $region32: #{smoothing_cross_entropy_loss.1} parent=27 // pred_fallthru
        _
      %v244 = vld [vmem:[%s220] sm:$0xff]
      %v245 = vld [vmem:[%s220 + $0x8] sm:$0xff]
      %v246 = vld [vmem:[%s220 + $0x10] sm:$0x1f]
      %v247 = vld [vmem:[%s220 + $0x18] sm:$0x1f]
      %v248 = vld [vmem:[%s229] sm:$0x3]
      %v249 = vlaneseq
      %v250 = vand.u32 %v249, 127
      %v251 = vadd.s32 %v250, 128
      %s252 = smul.u32 %s20, 256
      %v253 = vstv %s252
      %v254 = vadd.s32 %v250, %v253
      %v255 = vadd.s32 %v251, %v253
      %vm256 = vcmp.lt.s32.totalorder %v254, 200
      %vm257 = vcmp.lt.s32.totalorder %v255, 200
      %v258 = vsel %vm256, 1, 0
      %v259 = vsel %vm257, 1, 0
      %vm260 = vcmp.eq.s32.totalorder %v258, 1
      %vm261 = vcmp.eq.s32.totalorder %v259, 1
      %v262 = vsel %vm260, %v244, 0.0
      %v263 = vsel %vm261, %v245, 0.0
      %v264 = vsel %vm260, %v246, 0.0
      %v265 = vsel %vm261, %v247, 0.0
      %vm266 = vcmp.ne.s32.totalorder %v248, 999999
      %v267 = vsel %vm266, 1, 0
      %v268 = vlaneseq
      %v269 = vshrl.u32 %v268, 7
      %v270 = vsub.s32 0, %v269
      %v271 = vrot.slane %v267, %v270
      %v272 = vlaneseq
      %v273 = vshrl.u32 %v272, 7
      %v274 = vsub.s32 1, %v273
      %v275 = vrot.slane %v267, %v274
      %vm276 = vcmp.ne.s32.totalorder %v271, 0
      %vm277 = vcmp.ne.s32.totalorder %v275, 0
      %vm278 = vmand %vm256, %vm276
      %vm279 = vmand %vm257, %vm277
      %v280 = vsel %vm278, 1, 0
      %v281 = vsel %vm279, 1, 0
      %v282 = vcvt.s32.f32 %v280
      %v283 = vcvt.s32.f32 %v281
      %vm284 = vcmask 1044480
      %v285 = vsel %vm284, %v264, -inf
      %v286 = vmax.f32 %v262, %v285
      %v287 = vrot.slane %v286, 4
      %v288 = vmax.f32 %v286, %v287
      %v289 = vrot.slane %v288, 2
      %v290 = vmax.f32 %v288, %v289
      %v291 = vrot.slane %v290, 1
      %v292 = vmax.f32 %v290, %v291
      %v293 = vsel %vm284, %v265, -inf
      %v294 = vmax.f32 %v263, %v293
      %v295 = vrot.slane %v294, 4
      %v296 = vmax.f32 %v294, %v295
      %v297 = vrot.slane %v296, 2
      %v298 = vmax.f32 %v296, %v297
      %v299 = vrot.slane %v298, 1
      %v300 = vmax.f32 %v298, %v299
      %v301 = vsub.f32 %v262, %v292
      %v302 = vsub.f32 %v263, %v300
      %v303 = vsub.f32 %v264, %v292
      %v304 = vsub.f32 %v265, %v300
      %v305 = vmul.f32 %v301, 1.442695
      %v306 = vpow.pop %v305
      %v307 = vmul.f32 %v302, 1.442695
      %v308 = vpow.pop %v307
      %v309 = vmul.f32 %v303, 1.442695
      %v310 = vpow.pop %v309
      %v311 = vmul.f32 %v304, 1.442695
      %v312 = vpow.pop %v311
      %v313 = vsel %vm284, %v310, 0.0
      %v314 = vadd.f32 %v306, %v313
      %v315 = vrot.slane %v314, 4
      %v316 = vadd.f32 %v314, %v315
      %v317 = vrot.slane %v316, 2
      %v318 = vadd.f32 %v316, %v317
      %v319 = vrot.slane %v318, 1
      %v320 = vadd.f32 %v318, %v319
      %v321 = vsel %vm284, %v312, 0.0
      %v322 = vadd.f32 %v308, %v321
      %v323 = vrot.slane %v322, 4
      %v324 = vadd.f32 %v322, %v323
      %v325 = vrot.slane %v324, 2
      %v326 = vadd.f32 %v324, %v325
      %v327 = vrot.slane %v326, 1
      %v328 = vadd.f32 %v326, %v327
      %v329 = vlog2.pop %v320
      %v330 = vmul.f32 %v329, 0.6931472
      %v331 = vlog2.pop %v328
      %v332 = vmul.f32 %v331, 0.6931472
      %v333 = vlaneseq
      %v334 = vshrl.u32 %v333, 7
      %v335 = vadd.s32 %v334, 8
      %v336 = vlaneseq
      %v337 = vshrl.u32 %v336, 7
      %v338 = vsub.s32 0, %v337
      %v339 = vrot.slane %v248, %v338
      %v340 = vlaneseq
      %v341 = vshrl.u32 %v340, 7
      %v342 = vsub.s32 1, %v341
      %v343 = vrot.slane %v248, %v342
      %vm344 = vcmp.eq.s32.totalorder %v334, %v339
      %vm345 = vcmp.eq.s32.totalorder %v334, %v343
      %vm346 = vcmp.eq.s32.totalorder %v335, %v339
      %vm347 = vcmp.eq.s32.totalorder %v335, %v343
      %v348 = vsel %vm344, %v301, 0.0
      %v349 = vsel %vm345, %v302, 0.0
      %v350 = vsel %vm346, %v303, 0.0
      %v351 = vsel %vm347, %v304, 0.0
      %v352 = vsel %vm284, %v350, 0.0
      %v353 = vadd.f32 %v348, %v352
      %v354 = vrot.slane %v353, 4
      %v355 = vadd.f32 %v353, %v354
      %v356 = vrot.slane %v355, 2
      %v357 = vadd.f32 %v355, %v356
      %v358 = vrot.slane %v357, 1
      %v359 = vadd.f32 %v357, %v358
      %v360 = vsel %vm284, %v351, 0.0
      %v361 = vadd.f32 %v349, %v360
      %v362 = vrot.slane %v361, 4
      %v363 = vadd.f32 %v361, %v362
      %v364 = vrot.slane %v363, 2
      %v365 = vadd.f32 %v363, %v364
      %v366 = vrot.slane %v365, 1
      %v367 = vadd.f32 %v365, %v366
      %v368 = vsel %vm284, %v303, 0.0
      %v369 = vadd.f32 %v301, %v368
      %v370 = vrot.slane %v369, 4
      %v371 = vadd.f32 %v369, %v370
      %v372 = vrot.slane %v371, 2
      %v373 = vadd.f32 %v371, %v372
      %v374 = vrot.slane %v373, 1
      %v375 = vadd.f32 %v373, %v374
      %v376 = vsel %vm284, %v304, 0.0
      %v377 = vadd.f32 %v302, %v376
      %v378 = vrot.slane %v377, 4
      %v379 = vadd.f32 %v377, %v378
      %v380 = vrot.slane %v379, 2
      %v381 = vadd.f32 %v379, %v380
      %v382 = vrot.slane %v381, 1
      %v383 = vadd.f32 %v381, %v382
      %v384 = vmul.f32 %v375, 0.008333334
      %v385 = vmul.f32 %v383, 0.008333334
      %v386 = vmul.f32 %v359, 0.89166665
      %v387 = vmul.f32 %v367, 0.89166665
      %v388 = vadd.f32 %v384, %v386
      %v389 = vadd.f32 %v385, %v387
      %v390 = vsub.f32 %v330, %v388
      %v391 = vsub.f32 %v332, %v389
      %v392 = vld [vmem:[%s233] sm:$0x1]
      %v393 = vmul.f32 %v390, %v282
      %v394 = vmul.f32 %v391, %v283
      %vm395 = vcmask 1040384
      %v396 = vsel %vm395, %v393, 0.0
      %v397 = vsel %vm395, %v394, 0.0
      %v398 = vadd.f32 %v396, %v397
      %399 = vadd.xlane.f32.xlu0 %v398
      %v400 = vpop.xlane.xlu0 %399
      %v401 = vrot.slane %v400, 4
      %v402 = vadd.f32 %v400, %v401
      %v403 = vrot.slane %v402, 2
      %v404 = vadd.f32 %v402, %v403
      %v405 = vrot.slane %v404, 1
      %v406 = vadd.f32 %v404, %v405
      %s407 = vtos %v406
      %v408 = vstv %s407
      %v409 = vadd.f32 %v392, %v408
      %vm410 = vcmask 0
      %411 = vst.msk [vmem:[%s233] sm:$0x1] %vm410, %v409
      %v412 = vld [vmem:[%s236] sm:$0x1]
      %v413 = vsel %vm395, %v282, 0.0
      %v414 = vsel %vm395, %v283, 0.0
      %v415 = vadd.f32 %v413, %v414
      %416 = vadd.xlane.f32.xlu0 %v415
      %v417 = vpop.xlane.xlu0 %416
      %v418 = vrot.slane %v417, 4
      %v419 = vadd.f32 %v417, %v418
      %v420 = vrot.slane %v419, 2
      %v421 = vadd.f32 %v419, %v420
      %v422 = vrot.slane %v421, 1
      %v423 = vadd.f32 %v421, %v422
      %s424 = vtos %v423
      %v425 = vstv %s424
      %v426 = vadd.f32 %v412, %v425
      %427 = vst.msk [vmem:[%s236] sm:$0x1] %vm410, %v426
      %p428 = scmp.lt.s32.totalorder %s19, 1
      %s429 = scalar_select %p428, %s19, 1
      %s430 = scalar_lea.vmem %s2, %s429
      %p431 = scmp.lt.s32.totalorder %s19, 1
      %s432 = scalar_select %p431, %s19, 1
      %s433 = scalar_lea.vmem %s3, %s432
      // Predicated region
      $region33: #{smoothing_cross_entropy_loss.1} parent=27 // pred_check
        %p434 = pneg %p101
      $region34: #{smoothing_cross_entropy_loss.1} parent=27 // pred_check_branch
        %436 = sbr.rel (%p434) target = $region36
      $region35: #{smoothing_cross_entropy_loss.1} parent=27 // pred_region
        _
      $region36: #{smoothing_cross_entropy_loss.1} parent=27 // pred_fallthru
        _
      // Predicated region
      $region37: #{smoothing_cross_entropy_loss.1} parent=27 // pred_check
        %p437 = pneg %p127
      $region38: #{smoothing_cross_entropy_loss.1} parent=27 // pred_check_branch
        %439 = sbr.rel (%p437) target = $region40
      $region39: #{smoothing_cross_entropy_loss.1} parent=27 // pred_region
        _
      $region40: #{smoothing_cross_entropy_loss.1} parent=27 // pred_fallthru
        _
    $region28: #{smoothing_cross_entropy_loss.1} parent=5 // pred_fallthru
      _
    %p440 = scmp.le.s32.totalorder 2, %s10
    // Predicated region
    $region41: #{smoothing_cross_entropy_loss.1} parent=5 // pred_check
      %p441 = pneg %p440
    $region42: #{smoothing_cross_entropy_loss.1} parent=5 // pred_check_branch
      %443 = sbr.rel (%p441) target = $region44
    $region43: #{smoothing_cross_entropy_loss.1} parent=5 // pred_region
      %s444 = ssub.s32 %s10, 2
      // Predicated region
      $region45: #{smoothing_cross_entropy_loss.1} parent=43 // pred_check
        %p445 = pneg %p107
      $region46: #{smoothing_cross_entropy_loss.1} parent=43 // pred_check_branch
        %447 = sbr.rel (%p445) target = $region48
      $region47: #{smoothing_cross_entropy_loss.1} parent=43 // pred_region
        %p448 = scmp.lt.s32.totalorder %s21, 1
        %s449 = scalar_select %p448, %s21, 1
        %s450 = scalar_lea.vmem %s2, %s449
      $region48: #{smoothing_cross_entropy_loss.1} parent=43 // pred_fallthru
        _
      // Predicated region
      $region49: #{smoothing_cross_entropy_loss.1} parent=43 // pred_check
        %p451 = pneg %p133
      $region50: #{smoothing_cross_entropy_loss.1} parent=43 // pred_check_branch
        %453 = sbr.rel (%p451) target = $region52
      $region51: #{smoothing_cross_entropy_loss.1} parent=43 // pred_region
        %p454 = scmp.lt.s32.totalorder %s21, 1
        %s455 = scalar_select %p454, %s21, 1
        %s456 = scalar_lea.vmem %s3, %s455
      $region52: #{smoothing_cross_entropy_loss.1} parent=43 // pred_fallthru
        _
    $region44: #{smoothing_cross_entropy_loss.1} parent=5 // pred_fallthru
      _
  $region6: #{smoothing_cross_entropy_loss.1} parent=0 // loop_footer
    %s14 = sadd.s32 1, %s10
  $region7: #{smoothing_cross_entropy_loss.1} parent=0 // loop_footer_branch
    %9 = sbr.rel target = $region3
  $region8: #{smoothing_cross_entropy_loss.1} parent=0 // loop_exit
    _

</llo_original>
